<compile_context>
chip_gen: v5e
topology: v5e:2x2
jax: 0.10.0
libtpu: 0.0.40
codegen_flags: <defaults>
</compile_context>

<pallas_src>
import jax
import jax.numpy as jnp
from jax.experimental import pallas as pl
from jax.experimental.pallas import tpu as pltpu

IN_FEATURES = 10
OUT_FEATURES = 5
MAX_TB = 8192              # batch tile (multiple of 8); amortizes per-step overhead
SMALL_B_THRESHOLD = 256    # gridless whole-array path for B <= this
VMEM_LIMIT_BYTES = 32 * 1024 * 1024   # covers ~16 MiB of double-buffered tiles


def _round_up(a: int, m: int) -> int:
    return (a + m - 1) // m * m


def _cdiv(a: int, b: int) -> int:
    return (a + b - 1) // b


def _linear_kernel_vpu(x_ref, w_ref, b_ref, o_ref):
    """Tiny-batch path: unrolled VPU FMAs; avoids MXU push/pop latency.

    x_ref: (B, IN)  w_ref: (IN, OUT)  b_ref: (1, OUT)  o_ref: (B, OUT)
    """
    x = x_ref[...].astype(jnp.float32)
    w = w_ref[...].astype(jnp.float32)
    acc = jnp.broadcast_to(b_ref[...].astype(jnp.float32), o_ref.shape)
    for k in range(IN_FEATURES):          # fully unrolled, static slices
        acc = acc + x[:, k:k + 1] * w[k:k + 1, :]
    o_ref[...] = acc.astype(o_ref.dtype)


def _linear_kernel_mxu(x_ref, w_ref, b_ref, o_ref):
    """Batch-tiled path: MXU matmul, f32 accumulate, direct (tb, 5) store."""
    acc = jnp.dot(x_ref[...], w_ref[...], preferred_element_type=jnp.float32)
    o_ref[...] = (acc + b_ref[...].astype(jnp.float32)).astype(o_ref.dtype)


def linear_forward(x, w, b):
    """x: (B, IN_FEATURES); w: (IN_FEATURES, OUT_FEATURES); b: (OUT_FEATURES,)."""
    B = x.shape[0]
    if B == 0:
        return jnp.zeros((0, OUT_FEATURES), x.dtype)

    b2 = b.reshape(1, OUT_FEATURES)
    itemsize = jnp.dtype(x.dtype).itemsize
    cost = pl.CostEstimate(
        flops=2 * B * IN_FEATURES * OUT_FEATURES,
        transcendentals=0,
        bytes_accessed=(B * IN_FEATURES + IN_FEATURES * OUT_FEATURES
                        + OUT_FEATURES + B * OUT_FEATURES) * itemsize,
    )
    out_shape = jax.ShapeDtypeStruct((B, OUT_FEATURES), x.dtype)

    if B <= SMALL_B_THRESHOLD:
        # Whole problem in one gridless call: everything resident in VMEM,
        # no grid-step overhead, VPU-only compute.
        return pl.pallas_call(
            _linear_kernel_vpu,
            out_shape=out_shape,
            in_specs=[
                pl.BlockSpec(memory_space=pltpu.MemorySpace.VMEM),
                pl.BlockSpec(memory_space=pltpu.MemorySpace.VMEM),
                pl.BlockSpec(memory_space=pltpu.MemorySpace.VMEM),
            ],
            out_specs=pl.BlockSpec(memory_space=pltpu.MemorySpace.VMEM),
            cost_estimate=cost,
        )(x, w, b2)

    # Batch-tiled streaming path. Guarantee >= 2 tiles so the "parallel" axis
    # feeds both v7x TensorCores; Pallas masks the ragged last tile (OOB reads
    # only affect rows whose OOB writes are dropped — per-row math, so safe).
    tb = min(MAX_TB, _round_up(_cdiv(B, 2), 8))
    num_tiles = _cdiv(B, tb)

    return pl.pallas_call(
        _linear_kernel_mxu,
        out_shape=out_shape,
        grid=(num_tiles,),
        in_specs=[
            pl.BlockSpec((tb, IN_FEATURES), lambda i: (i, 0)),
            pl.BlockSpec((IN_FEATURES, OUT_FEATURES), lambda i: (0, 0)),  # resident
            pl.BlockSpec((1, OUT_FEATURES), lambda i: (0, 0)),            # resident
        ],
        out_specs=pl.BlockSpec((tb, OUT_FEATURES), lambda i: (i, 0)),
        compiler_params=pltpu.CompilerParams(
            dimension_semantics=("parallel",),
            vmem_limit_bytes=VMEM_LIMIT_BYTES,
        ),
        cost_estimate=cost,
    )(x, w, b2)


if __name__ == "__main__":
    key = jax.random.PRNGKey(0)
    k_x, k_w, k_b, k_x2, k_x3 = jax.random.split(key, 5)

    # nn.Linear-style uniform(-1/sqrt(in), 1/sqrt(in)) init.
    bound = 1.0 / (IN_FEATURES ** 0.5)
    w = jax.random.uniform(k_w, (IN_FEATURES, OUT_FEATURES), jnp.float32,
                           minval=-bound, maxval=bound)
    b = jax.random.uniform(k_b, (OUT_FEATURES,), jnp.float32,
                           minval=-bound, maxval=bound)

    # Small batch: gridless VMEM-resident VPU path.
    batch = 8
    x = jax.random.normal(k_x, (batch, IN_FEATURES), dtype=jnp.float32)
    out = jax.block_until_ready(linear_forward(x, w, b))
    ref = x @ w + b
    assert out.shape == (batch, OUT_FEATURES)
    assert jnp.allclose(out, ref, atol=1e-5), "mismatch vs reference (small batch)"

    # Mid batch: 2-tile parallel path with a ragged last tile.
    batch2 = 1000
    x2 = jax.random.normal(k_x2, (batch2, IN_FEATURES), dtype=jnp.float32)
    out2 = jax.block_until_ready(linear_forward(x2, w, b))
    ref2 = x2 @ w + b
    assert out2.shape == (batch2, OUT_FEATURES)
    assert jnp.allclose(out2, ref2, atol=1e-4), "mismatch vs reference (mid batch)"

    # Large batch: multi-tile (TB=8192) path with a ragged last tile.
    batch3 = 20000
    x3 = jax.random.normal(k_x3, (batch3, IN_FEATURES), dtype=jnp.float32)
    out3 = jax.block_until_ready(linear_forward(x3, w, b))
    ref3 = x3 @ w + b
    assert out3.shape == (batch3, OUT_FEATURES)
    assert jnp.allclose(out3, ref3, atol=1e-4), "mismatch vs reference (large batch)"

    # Empty-batch edge case.
    out0 = linear_forward(jnp.zeros((0, IN_FEATURES), jnp.float32), w, b)
    assert out0.shape == (0, OUT_FEATURES)

    print("KERNEL_OK")
</pallas_src>

<mosaic_0001>
module attributes {stable_mosaic.version = 11 : i64} {
  func.func @_linear_kernel_vpu(%arg0: memref<8x10xf32, #tpu.memory_space<vmem>>, %arg1: memref<10x5xf32, #tpu.memory_space<vmem>>, %arg2: memref<1x5xf32, #tpu.memory_space<vmem>>, %arg3: memref<8x5xf32, #tpu.memory_space<vmem>>) attributes {dimension_semantics = [], scalar_prefetch = 0 : i64, scratch_operands = 0 : i64, tpu.core_type = #tpu.core_type<tc>} {
    %c0 = arith.constant 0 : index
    %c0_0 = arith.constant 0 : index
    %0 = vector.load %arg0[%c0, %c0_0] : memref<8x10xf32, #tpu.memory_space<vmem>>, vector<8x10xf32>
    %c0_1 = arith.constant 0 : index
    %c0_2 = arith.constant 0 : index
    %1 = vector.load %arg1[%c0_1, %c0_2] : memref<10x5xf32, #tpu.memory_space<vmem>>, vector<10x5xf32>
    %c0_3 = arith.constant 0 : index
    %c0_4 = arith.constant 0 : index
    %2 = vector.load %arg2[%c0_3, %c0_4] : memref<1x5xf32, #tpu.memory_space<vmem>>, vector<1x5xf32>
    %3 = vector.shape_cast %2 : vector<1x5xf32> to vector<1x5xf32>
    %4 = vector.broadcast %3 : vector<1x5xf32> to vector<8x5xf32>
    %5 = vector.extract_strided_slice %0 {offsets = [0, 0], sizes = [8, 1], strides = [1, 1]} : vector<8x10xf32> to vector<8x1xf32>
    %6 = vector.extract_strided_slice %1 {offsets = [0, 0], sizes = [1, 5], strides = [1, 1]} : vector<10x5xf32> to vector<1x5xf32>
    %7 = vector.broadcast %5 : vector<8x1xf32> to vector<8x5xf32>
    %8 = vector.broadcast %6 : vector<1x5xf32> to vector<8x5xf32>
    %9 = arith.mulf %7, %8 : vector<8x5xf32>
    %10 = arith.addf %4, %9 : vector<8x5xf32>
    %11 = vector.extract_strided_slice %0 {offsets = [0, 1], sizes = [8, 1], strides = [1, 1]} : vector<8x10xf32> to vector<8x1xf32>
    %12 = vector.extract_strided_slice %1 {offsets = [1, 0], sizes = [1, 5], strides = [1, 1]} : vector<10x5xf32> to vector<1x5xf32>
    %13 = vector.broadcast %11 : vector<8x1xf32> to vector<8x5xf32>
    %14 = vector.broadcast %12 : vector<1x5xf32> to vector<8x5xf32>
    %15 = arith.mulf %13, %14 : vector<8x5xf32>
    %16 = arith.addf %10, %15 : vector<8x5xf32>
    %17 = vector.extract_strided_slice %0 {offsets = [0, 2], sizes = [8, 1], strides = [1, 1]} : vector<8x10xf32> to vector<8x1xf32>
    %18 = vector.extract_strided_slice %1 {offsets = [2, 0], sizes = [1, 5], strides = [1, 1]} : vector<10x5xf32> to vector<1x5xf32>
    %19 = vector.broadcast %17 : vector<8x1xf32> to vector<8x5xf32>
    %20 = vector.broadcast %18 : vector<1x5xf32> to vector<8x5xf32>
    %21 = arith.mulf %19, %20 : vector<8x5xf32>
    %22 = arith.addf %16, %21 : vector<8x5xf32>
    %23 = vector.extract_strided_slice %0 {offsets = [0, 3], sizes = [8, 1], strides = [1, 1]} : vector<8x10xf32> to vector<8x1xf32>
    %24 = vector.extract_strided_slice %1 {offsets = [3, 0], sizes = [1, 5], strides = [1, 1]} : vector<10x5xf32> to vector<1x5xf32>
    %25 = vector.broadcast %23 : vector<8x1xf32> to vector<8x5xf32>
    %26 = vector.broadcast %24 : vector<1x5xf32> to vector<8x5xf32>
    %27 = arith.mulf %25, %26 : vector<8x5xf32>
    %28 = arith.addf %22, %27 : vector<8x5xf32>
    %29 = vector.extract_strided_slice %0 {offsets = [0, 4], sizes = [8, 1], strides = [1, 1]} : vector<8x10xf32> to vector<8x1xf32>
    %30 = vector.extract_strided_slice %1 {offsets = [4, 0], sizes = [1, 5], strides = [1, 1]} : vector<10x5xf32> to vector<1x5xf32>
    %31 = vector.broadcast %29 : vector<8x1xf32> to vector<8x5xf32>
    %32 = vector.broadcast %30 : vector<1x5xf32> to vector<8x5xf32>
    %33 = arith.mulf %31, %32 : vector<8x5xf32>
    %34 = arith.addf %28, %33 : vector<8x5xf32>
    %35 = vector.extract_strided_slice %0 {offsets = [0, 5], sizes = [8, 1], strides = [1, 1]} : vector<8x10xf32> to vector<8x1xf32>
    %36 = vector.extract_strided_slice %1 {offsets = [5, 0], sizes = [1, 5], strides = [1, 1]} : vector<10x5xf32> to vector<1x5xf32>
    %37 = vector.broadcast %35 : vector<8x1xf32> to vector<8x5xf32>
    %38 = vector.broadcast %36 : vector<1x5xf32> to vector<8x5xf32>
    %39 = arith.mulf %37, %38 : vector<8x5xf32>
    %40 = arith.addf %34, %39 : vector<8x5xf32>
    %41 = vector.extract_strided_slice %0 {offsets = [0, 6], sizes = [8, 1], strides = [1, 1]} : vector<8x10xf32> to vector<8x1xf32>
    %42 = vector.extract_strided_slice %1 {offsets = [6, 0], sizes = [1, 5], strides = [1, 1]} : vector<10x5xf32> to vector<1x5xf32>
    %43 = vector.broadcast %41 : vector<8x1xf32> to vector<8x5xf32>
    %44 = vector.broadcast %42 : vector<1x5xf32> to vector<8x5xf32>
    %45 = arith.mulf %43, %44 : vector<8x5xf32>
    %46 = arith.addf %40, %45 : vector<8x5xf32>
    %47 = vector.extract_strided_slice %0 {offsets = [0, 7], sizes = [8, 1], strides = [1, 1]} : vector<8x10xf32> to vector<8x1xf32>
    %48 = vector.extract_strided_slice %1 {offsets = [7, 0], sizes = [1, 5], strides = [1, 1]} : vector<10x5xf32> to vector<1x5xf32>
    %49 = vector.broadcast %47 : vector<8x1xf32> to vector<8x5xf32>
    %50 = vector.broadcast %48 : vector<1x5xf32> to vector<8x5xf32>
    %51 = arith.mulf %49, %50 : vector<8x5xf32>
    %52 = arith.addf %46, %51 : vector<8x5xf32>
    %53 = vector.extract_strided_slice %0 {offsets = [0, 8], sizes = [8, 1], strides = [1, 1]} : vector<8x10xf32> to vector<8x1xf32>
    %54 = vector.extract_strided_slice %1 {offsets = [8, 0], sizes = [1, 5], strides = [1, 1]} : vector<10x5xf32> to vector<1x5xf32>
    %55 = vector.broadcast %53 : vector<8x1xf32> to vector<8x5xf32>
    %56 = vector.broadcast %54 : vector<1x5xf32> to vector<8x5xf32>
    %57 = arith.mulf %55, %56 : vector<8x5xf32>
    %58 = arith.addf %52, %57 : vector<8x5xf32>
    %59 = vector.extract_strided_slice %0 {offsets = [0, 9], sizes = [8, 1], strides = [1, 1]} : vector<8x10xf32> to vector<8x1xf32>
    %60 = vector.extract_strided_slice %1 {offsets = [9, 0], sizes = [1, 5], strides = [1, 1]} : vector<10x5xf32> to vector<1x5xf32>
    %61 = vector.broadcast %59 : vector<8x1xf32> to vector<8x5xf32>
    %62 = vector.broadcast %60 : vector<1x5xf32> to vector<8x5xf32>
    %63 = arith.mulf %61, %62 : vector<8x5xf32>
    %64 = arith.addf %58, %63 : vector<8x5xf32>
    %c0_5 = arith.constant 0 : index
    %c0_6 = arith.constant 0 : index
    %65 = vector.load %arg3[%c0_5, %c0_6] : memref<8x5xf32, #tpu.memory_space<vmem>>, vector<8x5xf32>
    tpu.vector_store %arg3[%c0_5, %c0_6], %64 {strides = array<i32>} : memref<8x5xf32, #tpu.memory_space<vmem>>, vector<8x5xf32>,
    return
  }
}

</mosaic_0001>

<llo_original>
// kernel: tpu_custom_call.1
$region0: #{tpu_custom_call.1}
  #allocation0 [shape = 'u32[]', space=smem, size = 0x4, offset = 0x4, fixed_abs, tag = 'smem constant byte address 0x4 - core index']
  #allocation1 [shape = 'u32[72,128]{1,0:T(1,128)}', space=vmem, size = 0x9000, scoped, tag = 'internal scratch']
  %s0 = inlined_call_operand.vmem [shape: f32[8,10], index: 0, kind: input, shape index: {}]
  %s1 = inlined_call_operand.vmem [shape: f32[10,5], index: 1, kind: input, shape index: {}]
  %s2 = inlined_call_operand.vmem [shape: f32[1,5], index: 2, kind: input, shape index: {}]
  %s3 = inlined_call_operand.hbm [shape: f32[8,5], index: 3, kind: output, shape index: {}]
  %s4 = sld [smem:[#allocation0]]
  $region22: #{tpu_custom_call.1} parent=0
    _
  %s6 = ssub.s32 1, %s4
  %s7 = scalar_select 0, %s6, %s4
  $region1: #{tpu_custom_call.1} parent=0
    #allocation2 [shape = 'u8[4096]{0}', space=vmem, size = 0x1000, scoped, tag = 'output window, operand 0, single buffered']
    #allocation3 [shape = 's32[1]{0}', space=sflag, size = 0x4, scoped, tag = 'scoped memory for tpu_custom_call.1']
    %8 = vsyncpa [#allocation3], 0
    // Predicated region
    $region2: #{tpu_custom_call.1} parent=1 // pred_check
      _
    $region3: #{tpu_custom_call.1} parent=1 // pred_check_branch
      %10 = sbr.rel (0) target = $region5
    $region4: #{tpu_custom_call.1} parent=1 // pred_region
      _
    $region5: #{tpu_custom_call.1} parent=1 // pred_fallthru
      _
    // Predicated region
    $region6: #{tpu_custom_call.1} parent=1 // pred_check
      _
    $region7: #{tpu_custom_call.1} parent=1 // pred_check_branch
      %12 = sbr.rel (0) target = $region9
    $region8: #{tpu_custom_call.1} parent=1 // pred_region
      _
    $region9: #{tpu_custom_call.1} parent=1 // pred_fallthru
      _
    // Predicated region
    $region10: #{tpu_custom_call.1} parent=1 // pred_check
      _
    $region11: #{tpu_custom_call.1} parent=1 // pred_check_branch
      %14 = sbr.rel (0) target = $region13
    $region12: #{tpu_custom_call.1} parent=1 // pred_region
      _
    $region13: #{tpu_custom_call.1} parent=1 // pred_fallthru
      _
    %v15 = vld [vmem:[%s0] sm:$0xff]
    %v16 = vld [vmem:[%s1] sm:$0xff]
    %v17 = vld [vmem:[%s1 + $0x8] sm:$0x3]
    %v18 = vld [vmem:[%s2] sm:$0x1]
    %v20 = vperm.slane %v18, 0
    %23 = vset.pattern.permute.xlu0 0
    %24 = vperm.xlu0 %23, %v15
    %v25 = vpop.permute.xlu0 %24
    %v27 = vperm.slane %v16, 0
    %v28 = vmul.f32 %v25, %v27
    %v29 = vadd.f32 %v20, %v28
    %30 = vset.pattern.permute.xlu0 1
    %31 = vperm.xlu0 %30, %v15
    %v32 = vpop.permute.xlu0 %31
    %v34 = vperm.slane %v16, 1
    %v35 = vmul.f32 %v32, %v34
    %v36 = vadd.f32 %v29, %v35
    %37 = vset.pattern.permute.xlu0 2
    %38 = vperm.xlu0 %37, %v15
    %v39 = vpop.permute.xlu0 %38
    %v41 = vperm.slane %v16, 2
    %v42 = vmul.f32 %v39, %v41
    %v43 = vadd.f32 %v36, %v42
    %44 = vset.pattern.permute.xlu0 3
    %45 = vperm.xlu0 %44, %v15
    %v46 = vpop.permute.xlu0 %45
    %v48 = vperm.slane %v16, 3
    %v49 = vmul.f32 %v46, %v48
    %v50 = vadd.f32 %v43, %v49
    %51 = vset.pattern.permute.xlu0 4
    %52 = vperm.xlu0 %51, %v15
    %v53 = vpop.permute.xlu0 %52
    %v55 = vperm.slane %v16, 4
    %v56 = vmul.f32 %v53, %v55
    %v57 = vadd.f32 %v50, %v56
    %58 = vset.pattern.permute.xlu0 5
    %59 = vperm.xlu0 %58, %v15
    %v60 = vpop.permute.xlu0 %59
    %v62 = vperm.slane %v16, 5
    %v63 = vmul.f32 %v60, %v62
    %v64 = vadd.f32 %v57, %v63
    %65 = vset.pattern.permute.xlu0 6
    %66 = vperm.xlu0 %65, %v15
    %v67 = vpop.permute.xlu0 %66
    %v69 = vperm.slane %v16, 6
    %v70 = vmul.f32 %v67, %v69
    %v71 = vadd.f32 %v64, %v70
    %72 = vset.pattern.permute.xlu0 7
    %73 = vperm.xlu0 %72, %v15
    %v74 = vpop.permute.xlu0 %73
    %v76 = vperm.slane %v16, 7
    %v77 = vmul.f32 %v74, %v76
    %v78 = vadd.f32 %v71, %v77
    %79 = vset.pattern.permute.xlu0 8
    %80 = vperm.xlu0 %79, %v15
    %v81 = vpop.permute.xlu0 %80
    %v83 = vperm.slane %v17, 0
    %v84 = vmul.f32 %v81, %v83
    %v85 = vadd.f32 %v78, %v84
    %86 = vset.pattern.permute.xlu0 9
    %87 = vperm.xlu0 %86, %v15
    %v88 = vpop.permute.xlu0 %87
    %v90 = vperm.slane %v17, 1
    %v91 = vmul.f32 %v88, %v90
    %v92 = vadd.f32 %v85, %v91
    %vm93 = vcmask 39936
    %94 = vst.msk [vmem:[#allocation2] sm:$0xff] %vm93, %v92
    // Predicated region
    $region14: #{tpu_custom_call.1} parent=1 // pred_check
      _
    $region15: #{tpu_custom_call.1} parent=1 // pred_check_branch
      %96 = sbr.rel (0) target = $region17
    $region16: #{tpu_custom_call.1} parent=1 // pred_region
      %98 = vsyncadd [#allocation3], 0
      %s100 = sshll.u32 [#allocation2], 4
      %s101 = int_to_ptr.vmem [resolvable:$true] %s100
      %s102 = sshll.u32 %s3, 4
      %s103 = int_to_ptr.hbm [resolvable:$true] %s102
      %105 = dma.vmem_to_hbm [thread:$0]  %s101, 128, %s103, [#allocation3]
    $region17: #{tpu_custom_call.1} parent=1 // pred_fallthru
      _
    // Predicated region
    $region18: #{tpu_custom_call.1} parent=1 // pred_check
      _
    $region19: #{tpu_custom_call.1} parent=1 // pred_check_branch
      %107 = sbr.rel (0) target = $region21
    $region20: #{tpu_custom_call.1} parent=1 // pred_region
      %109 = dma.done [#allocation3], 128
    $region21: #{tpu_custom_call.1} parent=1 // pred_fallthru
      _
    %110 = vsyncpa [#allocation3], 1

</llo_original>
